<compile_context>
chip_gen: v5e
topology: v5e:2x2
jax: 0.10.0
libtpu: 0.0.40
codegen_flags: <defaults>
</compile_context>

<pallas_src>
import jax
import jax.numpy as jnp
from jax import lax
from jax.experimental import pallas as pl
from jax.experimental.pallas import tpu as pltpu


# ----------------------------------------------------------------------------
# Kernel 1: attention model = two 1x1 convs (channel MLP) + spatial softmax.
#   x block:  (1, C, HW)  lane-dense (HW on lanes, C on sublanes)
#   weights (SMEM): w1 (C, Hd)  b1 (Hd,)  w2 (Hd,)  b2 (1,)
#   out block: (1, 1, HW) softmax over HW
# The whole channel MLP runs on the VPU as scalar-broadcast FMAs; no MXU, no
# (B, HW, Hd) lane-sparse intermediate, no wrapper transpose.
# ----------------------------------------------------------------------------
def _attention_kernel(x_ref, w1_ref, b1_ref, w2_ref, b2_ref, att_ref):
    _, C, HW = x_ref.shape
    Hd = w1_ref.shape[1]
    # Load each channel once as a lane-dense (1, HW) slab; reuse across Hd.
    xs = [x_ref[:, c, :] for c in range(C)]
    logits = jnp.zeros((1, HW), jnp.float32) + b2_ref[0]
    for hd in range(Hd):                       # Hd*C VPU FMAs, statically unrolled
        h = jnp.zeros((1, HW), jnp.float32) + b1_ref[hd]
        for c in range(C):
            h = h + xs[c] * w1_ref[c, hd]
        logits = logits + jnp.maximum(h, 0.0) * w2_ref[hd]
    m = jnp.max(logits, axis=-1, keepdims=True)
    e = jnp.exp(logits - m)
    denom = jnp.sum(e, axis=-1, keepdims=True)
    att_ref[0] = e / denom                     # exact normalization


def run_attention_model(x_low_nchw, params):
    B, C, H, W = x_low_nchw.shape
    HW = H * W
    # Keep channels on sublanes and HW on lanes: free reshape, no transpose.
    x = x_low_nchw.reshape(B, C, HW).astype(jnp.float32)
    w1, b1, w2, b2 = params
    # For large HW, switch to an HW-tiled online softmax (tiles sized for the
    # 64 MiB VMEM of v7x) instead of one whole-row block.
    att = pl.pallas_call(
        _attention_kernel,
        out_shape=jax.ShapeDtypeStruct((B, 1, HW), jnp.float32),
        grid_spec=pltpu.PrefetchScalarGridSpec(
            num_scalar_prefetch=0,
            grid=(B,),
            in_specs=[
                pl.BlockSpec((1, C, HW), lambda b: (b, 0, 0)),
                pl.BlockSpec(memory_space=pltpu.MemorySpace.SMEM),   # w1 (C, Hd)
                pl.BlockSpec(memory_space=pltpu.MemorySpace.SMEM),   # b1 (Hd,)
                pl.BlockSpec(memory_space=pltpu.MemorySpace.SMEM),   # w2 (Hd,)
                pl.BlockSpec(memory_space=pltpu.MemorySpace.SMEM),   # b2 (1,)
            ],
            out_specs=pl.BlockSpec((1, 1, HW), lambda b: (b, 0, 0)),
        ),
        compiler_params=pltpu.CompilerParams(dimension_semantics=("parallel",)),
    )(x, w1, b1, w2, b2)
    return att.reshape(B, H, W)


# ----------------------------------------------------------------------------
# Kernel 2 (fused): patch DMA-gather + feature MLP + expectation + classifier.
#   Grid over B ("parallel").  Per step:
#     - K DMAs copy (P, P, C) windows from x_high (HBM, channels-last) into a
#       VMEM scratch (no HBM round trip before the matmuls),
#     - lane-dense flatten to (K, F=P*P*C),
#     - feature MLP on the MXU (f32 accumulation),
#     - expectation = attention-weighted sum over K (VPU + sublane reduce),
#     - classifier matmul.
#   Outputs: patches (1, K, F) lane-dense block and y (1, 1, NC).
# ----------------------------------------------------------------------------
def _fused_gather_feature_classify_kernel(
        tops_ref, lefts_ref, x_high_ref, satt_ref,
        w1_ref, b1_ref, w2_ref, b2_ref, wc_ref, bc_ref,
        patches_ref, y_ref, pbuf, sems):
    K, P, _, C = pbuf.shape
    F = patches_ref.shape[-1]
    b = pl.program_id(0)

    # 1. Gather: one async DMA per patch, all issued up front, then waited.
    # TODO(synk): for large K use a bounded ring of in-flight copies (4-8 sems)
    # instead of a full static unroll.
    copies = []
    for k in range(K):
        i = b * K + k
        cp = pltpu.make_async_copy(
            x_high_ref.at[b, pl.ds(tops_ref[i], P), pl.ds(lefts_ref[i], P), :],
            pbuf.at[k],
            sems.at[k])
        cp.start()
        copies.append(cp)
    for cp in copies:
        cp.wait()

    # 2. Lane-dense flatten (K, P*P*C): in-VMEM relayout, written straight to
    #    the patches output (F = 256 -> unmasked lane-dense stores).
    xf = pbuf[...].reshape(K, F)
    patches_ref[0] = xf

    # 3. Feature MLP on the MXU (f32 accumulation).
    # TODO(synk): cast matmul operands to bf16 (keep f32 acc) when N/F/D grow
    # (v6e/v7x MXU is 2x faster on bf16); add an N-row-tiled grid for large B*K.
    h = jnp.maximum(
        jnp.dot(xf, w1_ref[...], preferred_element_type=jnp.float32)
        + b1_ref[...], 0.0)
    f = jnp.maximum(
        jnp.dot(h, w2_ref[...], preferred_element_type=jnp.float32)
        + b2_ref[...], 0.0)                                  # (K, D)

    # 4. Expectation: attention-weighted mean over K.
    # TODO(synk): exact ATS without-replacement estimator weighting may differ;
    # here features are averaged with attention normalized over K.
    w = satt_ref[0]                                          # (K, 1)
    wn = w / (jnp.sum(w, axis=0, keepdims=True) + 1e-8)      # (K, 1)
    sf = jnp.sum(f * wn, axis=0, keepdims=True)              # (1, D)

    # 5. Classifier.
    y = jnp.dot(sf, wc_ref[...], preferred_element_type=jnp.float32) + bc_ref[...]
    y_ref[0] = y


def run_sample_features_classify(x_high_nhwc, tops, lefts, sampled_attention,
                                 feat_params, cls_params, patch_size):
    B, Hh, Wh, C = x_high_nhwc.shape
    K = sampled_attention.shape[1]
    P = patch_size
    F = P * P * C
    w1, b1, w2, b2 = feat_params
    wc, bc = cls_params
    D = w1.shape[1]
    NC = wc.shape[1]
    satt = sampled_attention.reshape(B, K, 1).astype(jnp.float32)

    flops = 2 * B * K * (F * D + D * D + D) + 2 * B * D * NC
    bytes_accessed = 4 * (2 * B * K * F + F * D + D * D + D * NC + 3 * D + NC
                          + B * K + B * NC)

    patches_flat, y = pl.pallas_call(
        _fused_gather_feature_classify_kernel,
        out_shape=(jax.ShapeDtypeStruct((B, K, F), jnp.float32),
                   jax.ShapeDtypeStruct((B, 1, NC), jnp.float32)),
        grid_spec=pltpu.PrefetchScalarGridSpec(
            num_scalar_prefetch=0,
            grid=(B,),
            in_specs=[
                pl.BlockSpec(memory_space=pltpu.MemorySpace.SMEM),   # tops (N,)
                pl.BlockSpec(memory_space=pltpu.MemorySpace.SMEM),   # lefts (N,)
                pl.BlockSpec(memory_space=pl.ANY),                   # x_high in HBM
                pl.BlockSpec((1, K, 1), lambda b: (b, 0, 0)),        # sampled att
                pl.BlockSpec((F, D), lambda b: (0, 0)),              # w1
                pl.BlockSpec((1, D), lambda b: (0, 0)),              # b1
                pl.BlockSpec((D, D), lambda b: (0, 0)),              # w2
                pl.BlockSpec((1, D), lambda b: (0, 0)),              # b2
                pl.BlockSpec((D, NC), lambda b: (0, 0)),             # wc
                pl.BlockSpec((1, NC), lambda b: (0, 0)),             # bc
            ],
            out_specs=(
                pl.BlockSpec((1, K, F), lambda b: (b, 0, 0)),        # patches
                pl.BlockSpec((1, 1, NC), lambda b: (b, 0, 0)),       # y
            ),
            scratch_shapes=[pltpu.VMEM((K, P, P, C), jnp.float32),
                            pltpu.SemaphoreType.DMA((K,))],
        ),
        compiler_params=pltpu.CompilerParams(dimension_semantics=("parallel",)),
        cost_estimate=pl.CostEstimate(flops=flops, transcendentals=0,
                                      bytes_accessed=bytes_accessed),
    )(tops, lefts, x_high_nhwc.astype(jnp.float32), satt,
      w1, b1, w2, b2, wc, bc)
    return patches_flat, y.reshape(B, NC)


# ----------------------------------------------------------------------------
# Plain-JAX glue: stochastic sampling + low->high coordinate mapping.
# ----------------------------------------------------------------------------
def sample_patch_locations(attention_map, n_patches, key):
    """Sample n_patches positions without replacement (Gumbel top-k)."""
    B, H, W = attention_map.shape
    att_flat = attention_map.reshape(B, H * W)
    eps = 1e-8
    u = jax.random.uniform(key, att_flat.shape, minval=eps, maxval=1.0)
    gumbel = -jnp.log(-jnp.log(u))
    scores = jnp.log(att_flat + eps) + gumbel
    _, idx = lax.top_k(scores, n_patches)                 # (B, K) flat indices
    sampled_att = jnp.take_along_axis(att_flat, idx, axis=1)
    rows = idx // W
    cols = idx % W
    samples = jnp.stack([rows, cols], axis=-1)            # (B, K, 2) low-res
    return samples, sampled_att


def map_samples_to_high_res(samples, low_hw, high_hw, patch_size,
                            receptive_field=0):
    """Map low-res sample coords to high-res patch top-left corners."""
    # TODO(synk): exact FromTensors coordinate centering/rounding + offset
    # semantics are approximated with simple nearest scaling here.
    Hl, Wl = low_hw
    Hh, Wh = high_hw
    P = patch_size
    eff_h = Hl - receptive_field if Hl - receptive_field > 0 else Hl
    eff_w = Wl - receptive_field if Wl - receptive_field > 0 else Wl
    scale_h = Hh / float(eff_h)
    scale_w = Wh / float(eff_w)
    top = jnp.clip(jnp.round(samples[..., 0].astype(jnp.float32) * scale_h),
                   0, Hh - P).astype(jnp.int32)                  # (B, K)
    left = jnp.clip(jnp.round(samples[..., 1].astype(jnp.float32) * scale_w),
                    0, Wh - P).astype(jnp.int32)                 # (B, K)
    offsets = jnp.stack([top, left], axis=-1).astype(jnp.float32) \
        + (receptive_field / 2.0)
    return top.reshape(-1), left.reshape(-1), offsets


# ----------------------------------------------------------------------------
# ATSModel: attention map -> sample patches -> patch features -> expectation ->
# classification.  Returns (y, attention_map, patches, x_low, offsets).
# ----------------------------------------------------------------------------
class ATSModel:
    def __init__(self, n_patches, patch_size, channels=4, att_hidden=8,
                 feat_dim=32, n_classes=8, receptive_field=0, seed=1):
        self.n_patches = n_patches
        self.patch_size = patch_size
        self.receptive_field = receptive_field
        self.channels = channels

        k = jax.random.PRNGKey(seed)
        ks = jax.random.split(k, 8)
        C, Hd, D, NC = channels, att_hidden, feat_dim, n_classes
        F = patch_size * patch_size * C          # patch flattened in (p, q, c) order
        f32 = jnp.float32
        # attention model params (1x1 conv MLP), SMEM/scalar-read ready:
        #   w1 (C, Hd), b1 (Hd,), w2 (Hd,), b2 (1,)
        self.att_params = (
            jax.random.normal(ks[0], (C, Hd), f32) / jnp.sqrt(C),
            jnp.zeros((Hd,), f32),
            jax.random.normal(ks[1], (Hd,), f32) / jnp.sqrt(Hd),
            jnp.zeros((1,), f32),
        )
        # feature model params (MLP over flattened NHWC patches, P*P*C order)
        self.feat_params = (
            jax.random.normal(ks[2], (F, D), f32) / jnp.sqrt(F),
            jnp.zeros((1, D), f32),
            jax.random.normal(ks[3], (D, D), f32) / jnp.sqrt(D),
            jnp.zeros((1, D), f32),
        )
        # classifier params
        self.cls_params = (
            jax.random.normal(ks[4], (D, NC), f32) / jnp.sqrt(D),
            jnp.zeros((1, NC), f32),
        )

    def __call__(self, x_low, x_high, key):
        B, C, Hl, Wl = x_low.shape
        P, K = self.patch_size, self.n_patches

        # 1. attention map over low-res input (Pallas: lane-dense conv MLP + softmax)
        attention_map = run_attention_model(x_low, self.att_params)   # (B,Hl,Wl)

        # 2. sample patch locations (JAX glue) and map to high-res corners
        samples, sampled_attention = sample_patch_locations(
            attention_map, K, key)
        tops, lefts, offsets = map_samples_to_high_res(
            samples, (Hl, Wl), x_high.shape[2:], P, self.receptive_field)

        # The original module permutes x_high to channels-last before patch
        # extraction; channels-last also gives longer contiguous DMA rows.
        # (At scale, store x_high NHWC up front instead of transposing here.)
        x_high_nhwc = jnp.transpose(x_high, (0, 2, 3, 1))

        # 3+4+5. fused Pallas call: DMA-gather patches + feature MLP +
        #         expectation + classifier (patches stay VMEM-resident).
        patches_flat, y = run_sample_features_classify(
            x_high_nhwc, tops, lefts, sampled_attention,
            self.feat_params, self.cls_params, P)

        # (B, K, P*P*C) -> (B, K, C, P, P) for API parity with the PyTorch module.
        patches = patches_flat.reshape(B, K, P, P, C).transpose(0, 1, 4, 2, 3)
        return y, attention_map, patches, x_low, offsets


if __name__ == "__main__":
    B, C = 2, 4
    H_low = W_low = 16
    H_high = W_high = 32
    n_patches, patch_size = 4, 8

    key = jax.random.PRNGKey(0)
    k_low, k_high, k_sample = jax.random.split(key, 3)
    x_low = jax.random.normal(k_low, (B, C, H_low, W_low), jnp.float32)
    x_high = jax.random.normal(k_high, (B, C, H_high, W_high), jnp.float32)

    model = ATSModel(n_patches=n_patches, patch_size=patch_size, channels=C)
    outs = model(x_low, x_high, k_sample)
    outs = jax.block_until_ready(outs)

    y, attention_map, patches, x_low_out, offsets = outs
    assert y.shape == (B, 8)
    assert attention_map.shape == (B, H_low, W_low)
    assert patches.shape == (B, n_patches, C, patch_size, patch_size)
    assert offsets.shape == (B, n_patches, 2)
    assert bool(jnp.all(jnp.isfinite(y)))
    # softmax sanity: attention sums to 1 per batch element (exact divide)
    assert bool(jnp.allclose(jnp.sum(attention_map, axis=(1, 2)),
                             jnp.ones((B,)), atol=1e-3))
    print("KERNEL_OK")
</pallas_src>

<mosaic_0001>
module attributes {stable_mosaic.version = 11 : i64} {
  func.func @_attention_kernel(%arg0: i32, %arg1: memref<1x4x256xf32, #tpu.memory_space<vmem>>, %arg2: memref<4x8xf32, #tpu.memory_space<smem>>, %arg3: memref<8xf32, #tpu.memory_space<smem>>, %arg4: memref<8xf32, #tpu.memory_space<smem>>, %arg5: memref<1xf32, #tpu.memory_space<smem>>, %arg6: memref<1x1x256xf32, #tpu.memory_space<vmem>>) attributes {dimension_semantics = [#tpu.dimension_semantics<parallel>], iteration_bounds = array<i64: 2>, scalar_prefetch = 0 : i64, scratch_operands = 0 : i64, tpu.core_type = #tpu.core_type<tc>, window_params = [{transform_indices = @transform_0, window_bounds = array<i64: 1, 4, 256>}, {transform_indices = @transform_1, window_bounds = array<i64: 4, 8>}, {transform_indices = @transform_2, window_bounds = array<i64: 8>}, {transform_indices = @transform_3, window_bounds = array<i64: 8>}, {transform_indices = @transform_4, window_bounds = array<i64: 1>}, {transform_indices = @transform_5, window_bounds = array<i64: 1, 1, 256>}]} {
    %c0 = arith.constant 0 : index
    %c0_0 = arith.constant 0 : index
    %c0_1 = arith.constant 0 : index
    %0 = vector.load %arg1[%c0, %c0_0, %c0_1] : memref<1x4x256xf32, #tpu.memory_space<vmem>>, vector<1x1x256xf32>
    %1 = vector.shape_cast %0 : vector<1x1x256xf32> to vector<1x256xf32>
    %c0_2 = arith.constant 0 : index
    %c1 = arith.constant 1 : index
    %c0_3 = arith.constant 0 : index
    %2 = vector.load %arg1[%c0_2, %c1, %c0_3] : memref<1x4x256xf32, #tpu.memory_space<vmem>>, vector<1x1x256xf32>
    %3 = vector.shape_cast %2 : vector<1x1x256xf32> to vector<1x256xf32>
    %c0_4 = arith.constant 0 : index
    %c2 = arith.constant 2 : index
    %c0_5 = arith.constant 0 : index
    %4 = vector.load %arg1[%c0_4, %c2, %c0_5] : memref<1x4x256xf32, #tpu.memory_space<vmem>>, vector<1x1x256xf32>
    %5 = vector.shape_cast %4 : vector<1x1x256xf32> to vector<1x256xf32>
    %c0_6 = arith.constant 0 : index
    %c3 = arith.constant 3 : index
    %c0_7 = arith.constant 0 : index
    %6 = vector.load %arg1[%c0_6, %c3, %c0_7] : memref<1x4x256xf32, #tpu.memory_space<vmem>>, vector<1x1x256xf32>
    %7 = vector.shape_cast %6 : vector<1x1x256xf32> to vector<1x256xf32>
    %cst = arith.constant 0.000000e+00 : f32
    %8 = vector.broadcast %cst : f32 to vector<1x256xf32>
    %c0_8 = arith.constant 0 : index
    %9 = memref.load %arg5[%c0_8] : memref<1xf32, #tpu.memory_space<smem>>
    %10 = vector.broadcast %9 : f32 to vector<1x256xf32>
    %11 = arith.addf %8, %10 : vector<1x256xf32>
    %cst_9 = arith.constant 0.000000e+00 : f32
    %12 = vector.broadcast %cst_9 : f32 to vector<1x256xf32>
    %c0_10 = arith.constant 0 : index
    %13 = memref.load %arg3[%c0_10] : memref<8xf32, #tpu.memory_space<smem>>
    %14 = vector.broadcast %13 : f32 to vector<1x256xf32>
    %15 = arith.addf %12, %14 : vector<1x256xf32>
    %c0_11 = arith.constant 0 : index
    %c0_12 = arith.constant 0 : index
    %16 = memref.load %arg2[%c0_11, %c0_12] : memref<4x8xf32, #tpu.memory_space<smem>>
    %17 = vector.broadcast %16 : f32 to vector<1x256xf32>
    %18 = arith.mulf %1, %17 : vector<1x256xf32>
    %19 = arith.addf %15, %18 : vector<1x256xf32>
    %c1_13 = arith.constant 1 : index
    %c0_14 = arith.constant 0 : index
    %20 = memref.load %arg2[%c1_13, %c0_14] : memref<4x8xf32, #tpu.memory_space<smem>>
    %21 = vector.broadcast %20 : f32 to vector<1x256xf32>
    %22 = arith.mulf %3, %21 : vector<1x256xf32>
    %23 = arith.addf %19, %22 : vector<1x256xf32>
    %c2_15 = arith.constant 2 : index
    %c0_16 = arith.constant 0 : index
    %24 = memref.load %arg2[%c2_15, %c0_16] : memref<4x8xf32, #tpu.memory_space<smem>>
    %25 = vector.broadcast %24 : f32 to vector<1x256xf32>
    %26 = arith.mulf %5, %25 : vector<1x256xf32>
    %27 = arith.addf %23, %26 : vector<1x256xf32>
    %c3_17 = arith.constant 3 : index
    %c0_18 = arith.constant 0 : index
    %28 = memref.load %arg2[%c3_17, %c0_18] : memref<4x8xf32, #tpu.memory_space<smem>>
    %29 = vector.broadcast %28 : f32 to vector<1x256xf32>
    %30 = arith.mulf %7, %29 : vector<1x256xf32>
    %31 = arith.addf %27, %30 : vector<1x256xf32>
    %cst_19 = arith.constant 0.000000e+00 : f32
    %32 = vector.broadcast %cst_19 : f32 to vector<1x256xf32>
    %33 = arith.maximumf %31, %32 : vector<1x256xf32>
    %c0_20 = arith.constant 0 : index
    %34 = memref.load %arg4[%c0_20] : memref<8xf32, #tpu.memory_space<smem>>
    %35 = vector.broadcast %34 : f32 to vector<1x256xf32>
    %36 = arith.mulf %33, %35 : vector<1x256xf32>
    %37 = arith.addf %11, %36 : vector<1x256xf32>
    %cst_21 = arith.constant 0.000000e+00 : f32
    %38 = vector.broadcast %cst_21 : f32 to vector<1x256xf32>
    %c1_22 = arith.constant 1 : index
    %39 = memref.load %arg3[%c1_22] : memref<8xf32, #tpu.memory_space<smem>>
    %40 = vector.broadcast %39 : f32 to vector<1x256xf32>
    %41 = arith.addf %38, %40 : vector<1x256xf32>
    %c0_23 = arith.constant 0 : index
    %c1_24 = arith.constant 1 : index
    %42 = memref.load %arg2[%c0_23, %c1_24] : memref<4x8xf32, #tpu.memory_space<smem>>
    %43 = vector.broadcast %42 : f32 to vector<1x256xf32>
    %44 = arith.mulf %1, %43 : vector<1x256xf32>
    %45 = arith.addf %41, %44 : vector<1x256xf32>
    %c1_25 = arith.constant 1 : index
    %c1_26 = arith.constant 1 : index
    %46 = memref.load %arg2[%c1_25, %c1_26] : memref<4x8xf32, #tpu.memory_space<smem>>
    %47 = vector.broadcast %46 : f32 to vector<1x256xf32>
    %48 = arith.mulf %3, %47 : vector<1x256xf32>
    %49 = arith.addf %45, %48 : vector<1x256xf32>
    %c2_27 = arith.constant 2 : index
    %c1_28 = arith.constant 1 : index
    %50 = memref.load %arg2[%c2_27, %c1_28] : memref<4x8xf32, #tpu.memory_space<smem>>
    %51 = vector.broadcast %50 : f32 to vector<1x256xf32>
    %52 = arith.mulf %5, %51 : vector<1x256xf32>
    %53 = arith.addf %49, %52 : vector<1x256xf32>
    %c3_29 = arith.constant 3 : index
    %c1_30 = arith.constant 1 : index
    %54 = memref.load %arg2[%c3_29, %c1_30] : memref<4x8xf32, #tpu.memory_space<smem>>
    %55 = vector.broadcast %54 : f32 to vector<1x256xf32>
    %56 = arith.mulf %7, %55 : vector<1x256xf32>
    %57 = arith.addf %53, %56 : vector<1x256xf32>
    %cst_31 = arith.constant 0.000000e+00 : f32
    %58 = vector.broadcast %cst_31 : f32 to vector<1x256xf32>
    %59 = arith.maximumf %57, %58 : vector<1x256xf32>
    %c1_32 = arith.constant 1 : index
    %60 = memref.load %arg4[%c1_32] : memref<8xf32, #tpu.memory_space<smem>>
    %61 = vector.broadcast %60 : f32 to vector<1x256xf32>
    %62 = arith.mulf %59, %61 : vector<1x256xf32>
    %63 = arith.addf %37, %62 : vector<1x256xf32>
    %cst_33 = arith.constant 0.000000e+00 : f32
    %64 = vector.broadcast %cst_33 : f32 to vector<1x256xf32>
    %c2_34 = arith.constant 2 : index
    %65 = memref.load %arg3[%c2_34] : memref<8xf32, #tpu.memory_space<smem>>
    %66 = vector.broadcast %65 : f32 to vector<1x256xf32>
    %67 = arith.addf %64, %66 : vector<1x256xf32>
    %c0_35 = arith.constant 0 : index
    %c2_36 = arith.constant 2 : index
    %68 = memref.load %arg2[%c0_35, %c2_36] : memref<4x8xf32, #tpu.memory_space<smem>>
    %69 = vector.broadcast %68 : f32 to vector<1x256xf32>
    %70 = arith.mulf %1, %69 : vector<1x256xf32>
    %71 = arith.addf %67, %70 : vector<1x256xf32>
    %c1_37 = arith.constant 1 : index
    %c2_38 = arith.constant 2 : index
    %72 = memref.load %arg2[%c1_37, %c2_38] : memref<4x8xf32, #tpu.memory_space<smem>>
    %73 = vector.broadcast %72 : f32 to vector<1x256xf32>
    %74 = arith.mulf %3, %73 : vector<1x256xf32>
    %75 = arith.addf %71, %74 : vector<1x256xf32>
    %c2_39 = arith.constant 2 : index
    %c2_40 = arith.constant 2 : index
    %76 = memref.load %arg2[%c2_39, %c2_40] : memref<4x8xf32, #tpu.memory_space<smem>>
    %77 = vector.broadcast %76 : f32 to vector<1x256xf32>
    %78 = arith.mulf %5, %77 : vector<1x256xf32>
    %79 = arith.addf %75, %78 : vector<1x256xf32>
    %c3_41 = arith.constant 3 : index
    %c2_42 = arith.constant 2 : index
    %80 = memref.load %arg2[%c3_41, %c2_42] : memref<4x8xf32, #tpu.memory_space<smem>>
    %81 = vector.broadcast %80 : f32 to vector<1x256xf32>
    %82 = arith.mulf %7, %81 : vector<1x256xf32>
    %83 = arith.addf %79, %82 : vector<1x256xf32>
    %cst_43 = arith.constant 0.000000e+00 : f32
    %84 = vector.broadcast %cst_43 : f32 to vector<1x256xf32>
    %85 = arith.maximumf %83, %84 : vector<1x256xf32>
    %c2_44 = arith.constant 2 : index
    %86 = memref.load %arg4[%c2_44] : memref<8xf32, #tpu.memory_space<smem>>
    %87 = vector.broadcast %86 : f32 to vector<1x256xf32>
    %88 = arith.mulf %85, %87 : vector<1x256xf32>
    %89 = arith.addf %63, %88 : vector<1x256xf32>
    %cst_45 = arith.constant 0.000000e+00 : f32
    %90 = vector.broadcast %cst_45 : f32 to vector<1x256xf32>
    %c3_46 = arith.constant 3 : index
    %91 = memref.load %arg3[%c3_46] : memref<8xf32, #tpu.memory_space<smem>>
    %92 = vector.broadcast %91 : f32 to vector<1x256xf32>
    %93 = arith.addf %90, %92 : vector<1x256xf32>
    %c0_47 = arith.constant 0 : index
    %c3_48 = arith.constant 3 : index
    %94 = memref.load %arg2[%c0_47, %c3_48] : memref<4x8xf32, #tpu.memory_space<smem>>
    %95 = vector.broadcast %94 : f32 to vector<1x256xf32>
    %96 = arith.mulf %1, %95 : vector<1x256xf32>
    %97 = arith.addf %93, %96 : vector<1x256xf32>
    %c1_49 = arith.constant 1 : index
    %c3_50 = arith.constant 3 : index
    %98 = memref.load %arg2[%c1_49, %c3_50] : memref<4x8xf32, #tpu.memory_space<smem>>
    %99 = vector.broadcast %98 : f32 to vector<1x256xf32>
    %100 = arith.mulf %3, %99 : vector<1x256xf32>
    %101 = arith.addf %97, %100 : vector<1x256xf32>
    %c2_51 = arith.constant 2 : index
    %c3_52 = arith.constant 3 : index
    %102 = memref.load %arg2[%c2_51, %c3_52] : memref<4x8xf32, #tpu.memory_space<smem>>
    %103 = vector.broadcast %102 : f32 to vector<1x256xf32>
    %104 = arith.mulf %5, %103 : vector<1x256xf32>
    %105 = arith.addf %101, %104 : vector<1x256xf32>
    %c3_53 = arith.constant 3 : index
    %c3_54 = arith.constant 3 : index
    %106 = memref.load %arg2[%c3_53, %c3_54] : memref<4x8xf32, #tpu.memory_space<smem>>
    %107 = vector.broadcast %106 : f32 to vector<1x256xf32>
    %108 = arith.mulf %7, %107 : vector<1x256xf32>
    %109 = arith.addf %105, %108 : vector<1x256xf32>
    %cst_55 = arith.constant 0.000000e+00 : f32
    %110 = vector.broadcast %cst_55 : f32 to vector<1x256xf32>
    %111 = arith.maximumf %109, %110 : vector<1x256xf32>
    %c3_56 = arith.constant 3 : index
    %112 = memref.load %arg4[%c3_56] : memref<8xf32, #tpu.memory_space<smem>>
    %113 = vector.broadcast %112 : f32 to vector<1x256xf32>
    %114 = arith.mulf %111, %113 : vector<1x256xf32>
    %115 = arith.addf %89, %114 : vector<1x256xf32>
    %cst_57 = arith.constant 0.000000e+00 : f32
    %116 = vector.broadcast %cst_57 : f32 to vector<1x256xf32>
    %c4 = arith.constant 4 : index
    %117 = memref.load %arg3[%c4] : memref<8xf32, #tpu.memory_space<smem>>
    %118 = vector.broadcast %117 : f32 to vector<1x256xf32>
    %119 = arith.addf %116, %118 : vector<1x256xf32>
    %c0_58 = arith.constant 0 : index
    %c4_59 = arith.constant 4 : index
    %120 = memref.load %arg2[%c0_58, %c4_59] : memref<4x8xf32, #tpu.memory_space<smem>>
    %121 = vector.broadcast %120 : f32 to vector<1x256xf32>
    %122 = arith.mulf %1, %121 : vector<1x256xf32>
    %123 = arith.addf %119, %122 : vector<1x256xf32>
    %c1_60 = arith.constant 1 : index
    %c4_61 = arith.constant 4 : index
    %124 = memref.load %arg2[%c1_60, %c4_61] : memref<4x8xf32, #tpu.memory_space<smem>>
    %125 = vector.broadcast %124 : f32 to vector<1x256xf32>
    %126 = arith.mulf %3, %125 : vector<1x256xf32>
    %127 = arith.addf %123, %126 : vector<1x256xf32>
    %c2_62 = arith.constant 2 : index
    %c4_63 = arith.constant 4 : index
    %128 = memref.load %arg2[%c2_62, %c4_63] : memref<4x8xf32, #tpu.memory_space<smem>>
    %129 = vector.broadcast %128 : f32 to vector<1x256xf32>
    %130 = arith.mulf %5, %129 : vector<1x256xf32>
    %131 = arith.addf %127, %130 : vector<1x256xf32>
    %c3_64 = arith.constant 3 : index
    %c4_65 = arith.constant 4 : index
    %132 = memref.load %arg2[%c3_64, %c4_65] : memref<4x8xf32, #tpu.memory_space<smem>>
    %133 = vector.broadcast %132 : f32 to vector<1x256xf32>
    %134 = arith.mulf %7, %133 : vector<1x256xf32>
    %135 = arith.addf %131, %134 : vector<1x256xf32>
    %cst_66 = arith.constant 0.000000e+00 : f32
    %136 = vector.broadcast %cst_66 : f32 to vector<1x256xf32>
    %137 = arith.maximumf %135, %136 : vector<1x256xf32>
    %c4_67 = arith.constant 4 : index
    %138 = memref.load %arg4[%c4_67] : memref<8xf32, #tpu.memory_space<smem>>
    %139 = vector.broadcast %138 : f32 to vector<1x256xf32>
    %140 = arith.mulf %137, %139 : vector<1x256xf32>
    %141 = arith.addf %115, %140 : vector<1x256xf32>
    %cst_68 = arith.constant 0.000000e+00 : f32
    %142 = vector.broadcast %cst_68 : f32 to vector<1x256xf32>
    %c5 = arith.constant 5 : index
    %143 = memref.load %arg3[%c5] : memref<8xf32, #tpu.memory_space<smem>>
    %144 = vector.broadcast %143 : f32 to vector<1x256xf32>
    %145 = arith.addf %142, %144 : vector<1x256xf32>
    %c0_69 = arith.constant 0 : index
    %c5_70 = arith.constant 5 : index
    %146 = memref.load %arg2[%c0_69, %c5_70] : memref<4x8xf32, #tpu.memory_space<smem>>
    %147 = vector.broadcast %146 : f32 to vector<1x256xf32>
    %148 = arith.mulf %1, %147 : vector<1x256xf32>
    %149 = arith.addf %145, %148 : vector<1x256xf32>
    %c1_71 = arith.constant 1 : index
    %c5_72 = arith.constant 5 : index
    %150 = memref.load %arg2[%c1_71, %c5_72] : memref<4x8xf32, #tpu.memory_space<smem>>
    %151 = vector.broadcast %150 : f32 to vector<1x256xf32>
    %152 = arith.mulf %3, %151 : vector<1x256xf32>
    %153 = arith.addf %149, %152 : vector<1x256xf32>
    %c2_73 = arith.constant 2 : index
    %c5_74 = arith.constant 5 : index
    %154 = memref.load %arg2[%c2_73, %c5_74] : memref<4x8xf32, #tpu.memory_space<smem>>
    %155 = vector.broadcast %154 : f32 to vector<1x256xf32>
    %156 = arith.mulf %5, %155 : vector<1x256xf32>
    %157 = arith.addf %153, %156 : vector<1x256xf32>
    %c3_75 = arith.constant 3 : index
    %c5_76 = arith.constant 5 : index
    %158 = memref.load %arg2[%c3_75, %c5_76] : memref<4x8xf32, #tpu.memory_space<smem>>
    %159 = vector.broadcast %158 : f32 to vector<1x256xf32>
    %160 = arith.mulf %7, %159 : vector<1x256xf32>
    %161 = arith.addf %157, %160 : vector<1x256xf32>
    %cst_77 = arith.constant 0.000000e+00 : f32
    %162 = vector.broadcast %cst_77 : f32 to vector<1x256xf32>
    %163 = arith.maximumf %161, %162 : vector<1x256xf32>
    %c5_78 = arith.constant 5 : index
    %164 = memref.load %arg4[%c5_78] : memref<8xf32, #tpu.memory_space<smem>>
    %165 = vector.broadcast %164 : f32 to vector<1x256xf32>
    %166 = arith.mulf %163, %165 : vector<1x256xf32>
    %167 = arith.addf %141, %166 : vector<1x256xf32>
    %cst_79 = arith.constant 0.000000e+00 : f32
    %168 = vector.broadcast %cst_79 : f32 to vector<1x256xf32>
    %c6 = arith.constant 6 : index
    %169 = memref.load %arg3[%c6] : memref<8xf32, #tpu.memory_space<smem>>
    %170 = vector.broadcast %169 : f32 to vector<1x256xf32>
    %171 = arith.addf %168, %170 : vector<1x256xf32>
    %c0_80 = arith.constant 0 : index
    %c6_81 = arith.constant 6 : index
    %172 = memref.load %arg2[%c0_80, %c6_81] : memref<4x8xf32, #tpu.memory_space<smem>>
    %173 = vector.broadcast %172 : f32 to vector<1x256xf32>
    %174 = arith.mulf %1, %173 : vector<1x256xf32>
    %175 = arith.addf %171, %174 : vector<1x256xf32>
    %c1_82 = arith.constant 1 : index
    %c6_83 = arith.constant 6 : index
    %176 = memref.load %arg2[%c1_82, %c6_83] : memref<4x8xf32, #tpu.memory_space<smem>>
    %177 = vector.broadcast %176 : f32 to vector<1x256xf32>
    %178 = arith.mulf %3, %177 : vector<1x256xf32>
    %179 = arith.addf %175, %178 : vector<1x256xf32>
    %c2_84 = arith.constant 2 : index
    %c6_85 = arith.constant 6 : index
    %180 = memref.load %arg2[%c2_84, %c6_85] : memref<4x8xf32, #tpu.memory_space<smem>>
    %181 = vector.broadcast %180 : f32 to vector<1x256xf32>
    %182 = arith.mulf %5, %181 : vector<1x256xf32>
    %183 = arith.addf %179, %182 : vector<1x256xf32>
    %c3_86 = arith.constant 3 : index
    %c6_87 = arith.constant 6 : index
    %184 = memref.load %arg2[%c3_86, %c6_87] : memref<4x8xf32, #tpu.memory_space<smem>>
    %185 = vector.broadcast %184 : f32 to vector<1x256xf32>
    %186 = arith.mulf %7, %185 : vector<1x256xf32>
    %187 = arith.addf %183, %186 : vector<1x256xf32>
    %cst_88 = arith.constant 0.000000e+00 : f32
    %188 = vector.broadcast %cst_88 : f32 to vector<1x256xf32>
    %189 = arith.maximumf %187, %188 : vector<1x256xf32>
    %c6_89 = arith.constant 6 : index
    %190 = memref.load %arg4[%c6_89] : memref<8xf32, #tpu.memory_space<smem>>
    %191 = vector.broadcast %190 : f32 to vector<1x256xf32>
    %192 = arith.mulf %189, %191 : vector<1x256xf32>
    %193 = arith.addf %167, %192 : vector<1x256xf32>
    %cst_90 = arith.constant 0.000000e+00 : f32
    %194 = vector.broadcast %cst_90 : f32 to vector<1x256xf32>
    %c7 = arith.constant 7 : index
    %195 = memref.load %arg3[%c7] : memref<8xf32, #tpu.memory_space<smem>>
    %196 = vector.broadcast %195 : f32 to vector<1x256xf32>
    %197 = arith.addf %194, %196 : vector<1x256xf32>
    %c0_91 = arith.constant 0 : index
    %c7_92 = arith.constant 7 : index
    %198 = memref.load %arg2[%c0_91, %c7_92] : memref<4x8xf32, #tpu.memory_space<smem>>
    %199 = vector.broadcast %198 : f32 to vector<1x256xf32>
    %200 = arith.mulf %1, %199 : vector<1x256xf32>
    %201 = arith.addf %197, %200 : vector<1x256xf32>
    %c1_93 = arith.constant 1 : index
    %c7_94 = arith.constant 7 : index
    %202 = memref.load %arg2[%c1_93, %c7_94] : memref<4x8xf32, #tpu.memory_space<smem>>
    %203 = vector.broadcast %202 : f32 to vector<1x256xf32>
    %204 = arith.mulf %3, %203 : vector<1x256xf32>
    %205 = arith.addf %201, %204 : vector<1x256xf32>
    %c2_95 = arith.constant 2 : index
    %c7_96 = arith.constant 7 : index
    %206 = memref.load %arg2[%c2_95, %c7_96] : memref<4x8xf32, #tpu.memory_space<smem>>
    %207 = vector.broadcast %206 : f32 to vector<1x256xf32>
    %208 = arith.mulf %5, %207 : vector<1x256xf32>
    %209 = arith.addf %205, %208 : vector<1x256xf32>
    %c3_97 = arith.constant 3 : index
    %c7_98 = arith.constant 7 : index
    %210 = memref.load %arg2[%c3_97, %c7_98] : memref<4x8xf32, #tpu.memory_space<smem>>
    %211 = vector.broadcast %210 : f32 to vector<1x256xf32>
    %212 = arith.mulf %7, %211 : vector<1x256xf32>
    %213 = arith.addf %209, %212 : vector<1x256xf32>
    %cst_99 = arith.constant 0.000000e+00 : f32
    %214 = vector.broadcast %cst_99 : f32 to vector<1x256xf32>
    %215 = arith.maximumf %213, %214 : vector<1x256xf32>
    %c7_100 = arith.constant 7 : index
    %216 = memref.load %arg4[%c7_100] : memref<8xf32, #tpu.memory_space<smem>>
    %217 = vector.broadcast %216 : f32 to vector<1x256xf32>
    %218 = arith.mulf %215, %217 : vector<1x256xf32>
    %219 = arith.addf %193, %218 : vector<1x256xf32>
    %cst_101 = arith.constant dense<0xFF800000> : vector<1xf32>
    %220 = vector.multi_reduction <maximumf>, %219, %cst_101 [1] : vector<1x256xf32> to vector<1xf32>
    %221 = vector.shape_cast %220 : vector<1xf32> to vector<1x1xf32>
    %222 = vector.broadcast %221 : vector<1x1xf32> to vector<1x256xf32>
    %223 = arith.subf %219, %222 : vector<1x256xf32>
    %224 = math.exp %223 : vector<1x256xf32>
    %cst_102 = arith.constant dense<0.000000e+00> : vector<1xf32>
    %225 = vector.multi_reduction <add>, %224, %cst_102 [1] : vector<1x256xf32> to vector<1xf32>
    %226 = vector.shape_cast %225 : vector<1xf32> to vector<1x1xf32>
    %227 = vector.broadcast %226 : vector<1x1xf32> to vector<1x256xf32>
    %228 = arith.divf %224, %227 : vector<1x256xf32>
    %c0_103 = arith.constant 0 : index
    %c0_104 = arith.constant 0 : index
    %c0_105 = arith.constant 0 : index
    %229 = vector.load %arg6[%c0_103, %c0_104, %c0_105] : memref<1x1x256xf32, #tpu.memory_space<vmem>>, vector<1x1x256xf32>
    %230 = vector.shape_cast %229 : vector<1x1x256xf32> to vector<1x256xf32>
    %231 = vector.shape_cast %228 : vector<1x256xf32> to vector<1x1x256xf32>
    tpu.vector_store %arg6[%c0_103, %c0_104, %c0_105], %231 {strides = array<i32>} : memref<1x1x256xf32, #tpu.memory_space<vmem>>, vector<1x1x256xf32>,
    return
  }
  func.func @transform_0(%arg0: i32) -> (i32, i32, i32) {
    %c0_i32 = arith.constant 0 : i32
    %c0_i32_0 = arith.constant 0 : i32
    %c0_i32_1 = arith.constant 0 : i32
    return %arg0, %c0_i32, %c0_i32_0 : i32, i32, i32
  }
  func.func @transform_1(%arg0: i32) -> (i32, i32) {
    %c0_i32 = arith.constant 0 : i32
    %c0_i32_0 = arith.constant 0 : i32
    %c0_i32_1 = arith.constant 0 : i32
    return %c0_i32, %c0_i32_0 : i32, i32
  }
  func.func @transform_2(%arg0: i32) -> i32 {
    %c0_i32 = arith.constant 0 : i32
    %c0_i32_0 = arith.constant 0 : i32
    return %c0_i32 : i32
  }
  func.func @transform_3(%arg0: i32) -> i32 {
    %c0_i32 = arith.constant 0 : i32
    %c0_i32_0 = arith.constant 0 : i32
    return %c0_i32 : i32
  }
  func.func @transform_4(%arg0: i32) -> i32 {
    %c0_i32 = arith.constant 0 : i32
    %c0_i32_0 = arith.constant 0 : i32
    return %c0_i32 : i32
  }
  func.func @transform_5(%arg0: i32) -> (i32, i32, i32) {
    %c0_i32 = arith.constant 0 : i32
    %c0_i32_0 = arith.constant 0 : i32
    %c0_i32_1 = arith.constant 0 : i32
    return %arg0, %c0_i32, %c0_i32_0 : i32, i32, i32
  }
}

</mosaic_0001>

<llo_original>
// kernel: tpu_custom_call.1
$region0: #{tpu_custom_call.1}
  #allocation0 [shape = 'u32[]', space=smem, size = 0x4, offset = 0x4, fixed_abs, tag = 'smem constant byte address 0x4 - core index']
  #allocation1 [shape = 'u32[72,128]{1,0:T(1,128)}', space=vmem, size = 0x9000, scoped, tag = 'internal scratch']
  #allocation2 [shape = 'f32[1]{0:T(128)S(6)}', space=smem, size = 0x200, scoped, tag = 'scoped memory for tpu_custom_call.1']
  %s0 = inlined_call_operand.hbm [shape: f32[2,4,256], index: 0, kind: input, shape index: {}]
  %s1 = inlined_call_operand.hbm [shape: f32[4,8], index: 1, kind: input, shape index: {}]
  %s2 = inlined_call_operand.vmem [shape: f32[8], index: 2, kind: input, shape index: {}]
  %s3 = inlined_call_operand.vmem [shape: f32[8], index: 3, kind: input, shape index: {}]
  %s4 = inlined_call_operand.<no memory space> [shape: f32[1], index: 4, kind: input, shape index: {}]
  %s5 = inlined_call_operand.hbm [shape: f32[2,1,256], index: 5, kind: output, shape index: {}]
  %s6 = sld [smem:[#allocation0]]
  $region69: #{tpu_custom_call.1} parent=0
    _
  %s8 = ssub.s32 1, %s6
  %s9 = scalar_select 0, %s8, %s6
  %10 = sst [smem:[#allocation2]] %s4
  $region1: #{tpu_custom_call.1} parent=0
    #allocation3 [shape = 'u8[8192]{0}', space=vmem, size = 0x2000, scoped, tag = 'input window, operand 0']
    #allocation4 [shape = 's32[2]{0}', space=sflag, size = 0x8, scoped, tag = 'scoped memory for tpu_custom_call.1']
    #allocation5 [shape = 's32[2]{0}', space=sflag, size = 0x8, scoped, tag = 'scoped memory for tpu_custom_call.1']
    #allocation6 [shape = 's32[2]{0}', space=sflag, size = 0x8, scoped, tag = 'scoped memory for tpu_custom_call.1']
    #allocation7 [shape = 's32[2]{0}', space=sflag, size = 0x8, scoped, tag = 'scoped memory for tpu_custom_call.1']
    #allocation8 [shape = 'u8[2048]{0}', space=smem, size = 0x800, scoped, tag = 'input window, operand 1, single buffered']
    #allocation9 [shape = 'u8[512]{0}', space=smem, size = 0x200, scoped, tag = 'input window, operand 2, single buffered']
    #allocation10 [shape = 'u8[512]{0}', space=smem, size = 0x200, scoped, tag = 'input window, operand 3, single buffered']
    #allocation11 [shape = 's32[1]{0}', space=sflag, size = 0x4, scoped, tag = 'scoped memory for tpu_custom_call.1']
    #allocation12 [shape = 'u8[2048]{0}', space=vmem, size = 0x800, scoped, tag = 'output window, operand 0']
    %11 = vsyncpa [#allocation4], 0
    %s12 = scalar_lea.sflag [#allocation4], 1
    %13 = vsyncpa %s12, 0
    %14 = vsyncpa [#allocation6], 0
    %15 = vsyncpa [#allocation7], 0
    %16 = vsyncpa [#allocation11], 0
    %17 = vsyncpa [#allocation5], 0
    %s18 = scalar_lea.sflag [#allocation5], 1
    %19 = vsyncpa %s18, 0
    loop: start=0, step=1, limit=4
    $region2: #{tpu_custom_call.1} parent=1 // loop_pre_header
      _
    $region3: #{tpu_custom_call.1} parent=1 // loop_header
      %s21 = sphi 0, %s25
      %p22 = scmp.ge.s32.totalorder %s21, 4
      %s31 = sphi 0, %s33
      %s34 = sphi 0, %s31
      %s35 = sphi 0, %s34
      %s51 = sphi 0, %s35
      %s55 = sphi 0, %s55
      %s57 = sphi 0, %s55
      %s58 = sphi 0, %s57
      %s72 = sphi 0, %s58
      %s76 = sphi 0, %s76
      %s78 = sphi 0, %s76
      %s79 = sphi 0, %s78
      %s93 = sphi 0, %s79
      %s97 = sphi 0, %s97
      %s99 = sphi 0, %s97
      %s100 = sphi 0, %s99
      %s114 = sphi 0, %s100
      %s118 = sphi 0, %s118
      %s120 = sphi 0, %s118
      %s121 = sphi 0, %s120
      %s135 = sphi 0, %s121
      %s141 = sphi 0, %s143
      %s144 = sphi 0, %s141
      %s145 = sphi 0, %s144
      %s161 = sphi 0, %s145
    $region4: #{tpu_custom_call.1} parent=1 // loop_header_branch
      %24 = sbr.rel (%p22) target = $region8
    $region5: #{tpu_custom_call.1} parent=1 // loop_body
      %s26 = ssub.s32 %s21, 1
      %s27 = ssub.s32 %s21, 2
      %s28 = sadd.s32 %s21, 1
      %s29 = ssub.s32 %s21, %s28
      %p30 = scmp.eq.s32.totalorder %s29, 0
      %s32 = sadd.s32 %s31, 1
      %s33 = scalar_select %p30, %s31, %s32
      %p36 = pneg %p30
      %p37 = scmp.eq.s32.totalorder %s21, 1
      %p38 = por %p36, %p37
      %p39 = scmp.ne.s32.totalorder %s31, %s34
      %p40 = scmp.eq.s32.totalorder %s21, 0
      %p41 = por %p39, %p40
      %p42 = scmp.ne.s32.totalorder %s31, %s34
      %p43 = scmp.eq.s32.totalorder %s26, 1
      %p44 = por %p42, %p43
      %p45 = scmp.ne.s32.totalorder %s34, %s35
      %p46 = scmp.eq.s32.totalorder %s26, 0
      %p47 = por %p45, %p46
      %p48 = scmp.ne.s32.totalorder %s34, %s35
      %p49 = scmp.eq.s32.totalorder %s27, 1
      %p50 = por %p48, %p49
      %p52 = scmp.ne.s32.totalorder %s35, %s51
      %p53 = scmp.eq.s32.totalorder %s27, 0
      %p54 = por %p52, %p53
      %s56 = sadd.s32 %s55, 1
      %p59 = scmp.eq.s32.totalorder %s21, 1
      %p60 = scmp.ne.s32.totalorder %s55, %s57
      %p61 = scmp.eq.s32.totalorder %s21, 0
      %p62 = por %p60, %p61
      %p63 = scmp.ne.s32.totalorder %s55, %s57
      %p64 = scmp.eq.s32.totalorder %s26, 1
      %p65 = por %p63, %p64
      %p66 = scmp.ne.s32.totalorder %s57, %s58
      %p67 = scmp.eq.s32.totalorder %s26, 0
      %p68 = por %p66, %p67
      %p69 = scmp.ne.s32.totalorder %s57, %s58
      %p70 = scmp.eq.s32.totalorder %s27, 1
      %p71 = por %p69, %p70
      %p73 = scmp.ne.s32.totalorder %s58, %s72
      %p74 = scmp.eq.s32.totalorder %s27, 0
      %p75 = por %p73, %p74
      %s77 = sadd.s32 %s76, 1
      %p80 = scmp.eq.s32.totalorder %s21, 1
      %p81 = scmp.ne.s32.totalorder %s76, %s78
      %p82 = scmp.eq.s32.totalorder %s21, 0
      %p83 = por %p81, %p82
      %p84 = scmp.ne.s32.totalorder %s76, %s78
      %p85 = scmp.eq.s32.totalorder %s26, 1
      %p86 = por %p84, %p85
      %p87 = scmp.ne.s32.totalorder %s78, %s79
      %p88 = scmp.eq.s32.totalorder %s26, 0
      %p89 = por %p87, %p88
      %p90 = scmp.ne.s32.totalorder %s78, %s79
      %p91 = scmp.eq.s32.totalorder %s27, 1
      %p92 = por %p90, %p91
      %p94 = scmp.ne.s32.totalorder %s79, %s93
      %p95 = scmp.eq.s32.totalorder %s27, 0
      %p96 = por %p94, %p95
      %s98 = sadd.s32 %s97, 1
      %p101 = scmp.eq.s32.totalorder %s21, 1
      %p102 = scmp.ne.s32.totalorder %s97, %s99
      %p103 = scmp.eq.s32.totalorder %s21, 0
      %p104 = por %p102, %p103
      %p105 = scmp.ne.s32.totalorder %s97, %s99
      %p106 = scmp.eq.s32.totalorder %s26, 1
      %p107 = por %p105, %p106
      %p108 = scmp.ne.s32.totalorder %s99, %s100
      %p109 = scmp.eq.s32.totalorder %s26, 0
      %p110 = por %p108, %p109
      %p111 = scmp.ne.s32.totalorder %s99, %s100
      %p112 = scmp.eq.s32.totalorder %s27, 1
      %p113 = por %p111, %p112
      %p115 = scmp.ne.s32.totalorder %s100, %s114
      %p116 = scmp.eq.s32.totalorder %s27, 0
      %p117 = por %p115, %p116
      %s119 = sadd.s32 %s118, 1
      %p122 = scmp.eq.s32.totalorder %s21, 1
      %p123 = scmp.ne.s32.totalorder %s118, %s120
      %p124 = scmp.eq.s32.totalorder %s21, 0
      %p125 = por %p123, %p124
      %p126 = scmp.ne.s32.totalorder %s118, %s120
      %p127 = scmp.eq.s32.totalorder %s26, 1
      %p128 = por %p126, %p127
      %p129 = scmp.ne.s32.totalorder %s120, %s121
      %p130 = scmp.eq.s32.totalorder %s26, 0
      %p131 = por %p129, %p130
      %p132 = scmp.ne.s32.totalorder %s120, %s121
      %p133 = scmp.eq.s32.totalorder %s27, 1
      %p134 = por %p132, %p133
      %p136 = scmp.ne.s32.totalorder %s121, %s135
      %p137 = scmp.eq.s32.totalorder %s27, 0
      %p138 = por %p136, %p137
      %s139 = ssub.s32 %s21, %s28
      %p140 = scmp.eq.s32.totalorder %s139, 0
      %s142 = sadd.s32 %s141, 1
      %s143 = scalar_select %p140, %s141, %s142
      %p146 = pneg %p140
      %p147 = scmp.eq.s32.totalorder %s21, 1
      %p148 = por %p146, %p147
      %p149 = scmp.ne.s32.totalorder %s141, %s144
      %p150 = scmp.eq.s32.totalorder %s21, 0
      %p151 = por %p149, %p150
      %p152 = scmp.ne.s32.totalorder %s141, %s144
      %p153 = scmp.eq.s32.totalorder %s26, 1
      %p154 = por %p152, %p153
      %p155 = scmp.ne.s32.totalorder %s144, %s145
      %p156 = scmp.eq.s32.totalorder %s26, 0
      %p157 = por %p155, %p156
      %p158 = scmp.ne.s32.totalorder %s144, %s145
      %p159 = scmp.eq.s32.totalorder %s27, 1
      %p160 = por %p158, %p159
      %p162 = scmp.ne.s32.totalorder %s145, %s161
      %p163 = scmp.eq.s32.totalorder %s27, 0
      %p164 = por %p162, %p163
      %p165 = scmp.le.s32.totalorder 1, %s21
      %p166 = scmp.lt.s32.totalorder %s21, 3
      %p167 = pnand %p165, %p166
      %p168 = pneg %p167
      // Predicated region
      $region9: #{tpu_custom_call.1} parent=5 // pred_check
        _
      $region10: #{tpu_custom_call.1} parent=5 // pred_check_branch
        %170 = sbr.rel (%p167) target = $region12
      $region11: #{tpu_custom_call.1} parent=5 // pred_region
        %s171 = ssub.s32 %s21, 1
        // Predicated region
        $region13: #{tpu_custom_call.1} parent=11 // pred_check
          %p172 = pneg %p68
        $region14: #{tpu_custom_call.1} parent=11 // pred_check_branch
          %174 = sbr.rel (%p172) target = $region16
        $region15: #{tpu_custom_call.1} parent=11 // pred_region
          %176 = vsyncadd [#allocation6], 0
          %s178 = sshll.u32 %s1, 4
          %s179 = int_to_ptr.hbm [resolvable:$true] %s178
          %181 = dma.hbm_to_smem %s179, 64, [#allocation8], [#allocation6]
        $region16: #{tpu_custom_call.1} parent=11 // pred_fallthru
          _
        // Predicated region
        $region17: #{tpu_custom_call.1} parent=11 // pred_check
          %p182 = pneg %p89
        $region18: #{tpu_custom_call.1} parent=11 // pred_check_branch
          %184 = sbr.rel (%p182) target = $region20
        $region19: #{tpu_custom_call.1} parent=11 // pred_region
          %186 = vsyncadd [#allocation7], 0
          %s188 = sshll.u32 %s2, 4
          %s189 = int_to_ptr.vmem [resolvable:$true] %s188
          %191 = dma.vmem_to_smem %s189, 16, [#allocation9], [#allocation7]
        $region20: #{tpu_custom_call.1} parent=11 // pred_fallthru
          _
        // Predicated region
        $region21: #{tpu_custom_call.1} parent=11 // pred_check
          %p192 = pneg %p110
        $region22: #{tpu_custom_call.1} parent=11 // pred_check_branch
          %194 = sbr.rel (%p192) target = $region24
        $region23: #{tpu_custom_call.1} parent=11 // pred_region
          %196 = vsyncadd [#allocation11], 0
          %s198 = sshll.u32 %s3, 4
          %s199 = int_to_ptr.vmem [resolvable:$true] %s198
          %201 = dma.vmem_to_smem %s199, 16, [#allocation10], [#allocation11]
        $region24: #{tpu_custom_call.1} parent=11 // pred_fallthru
          _
        // Predicated region
        $region25: #{tpu_custom_call.1} parent=11 // pred_check
          %p202 = pneg %p131
        $region26: #{tpu_custom_call.1} parent=11 // pred_check_branch
          %204 = sbr.rel (%p202) target = $region28
        $region27: #{tpu_custom_call.1} parent=11 // pred_region
          _
        $region28: #{tpu_custom_call.1} parent=11 // pred_fallthru
          _
      $region12: #{tpu_custom_call.1} parent=5 // pred_fallthru
        _
      %p205 = scmp.lt.s32.totalorder %s21, 2
      // Predicated region
      $region29: #{tpu_custom_call.1} parent=5 // pred_check
        %p206 = pneg %p205
      $region30: #{tpu_custom_call.1} parent=5 // pred_check_branch
        %208 = sbr.rel (%p206) target = $region32
      $region31: #{tpu_custom_call.1} parent=5 // pred_region
        // Predicated region
        $region33: #{tpu_custom_call.1} parent=31 // pred_check
          %p209 = pneg %p41
        $region34: #{tpu_custom_call.1} parent=31 // pred_check_branch
          %211 = sbr.rel (%p209) target = $region36
        $region35: #{tpu_custom_call.1} parent=31 // pred_region
          %s212 = sand.u32 %s31, 1
          %s213 = scalar_lea.sflag [#allocation4], %s212
          %s214 = sand.u32 %s31, 1
          %s215 = smul.addr %s214, 8
          %s216 = scalar_lea.vmem [#allocation3], %s215
          %218 = vsyncadd %s213, 0
          %s219 = smul.addr %s21, 2
          %s220 = smul.addr %s219, 4
          %s221 = scalar_lea.hbm %s0, %s220
          %s223 = sshll.u32 %s221, 4
          %s224 = int_to_ptr.hbm [resolvable:$true] %s223
          %s225 = sshll.u32 %s216, 4
          %s226 = int_to_ptr.vmem [resolvable:$true] %s225
          %228 = dma.hbm_to_vmem [thread:$0]  %s224, 128, %s226, %s213
        $region36: #{tpu_custom_call.1} parent=31 // pred_fallthru
          _
      $region32: #{tpu_custom_call.1} parent=5 // pred_fallthru
        _
      %p229 = scmp.le.s32.totalorder 1, %s21
      %p230 = scmp.lt.s32.totalorder %s21, 3
      %p231 = pnand %p229, %p230
      %p232 = pneg %p231
      // Predicated region
      $region37: #{tpu_custom_call.1} parent=5 // pred_check
        _
      $region38: #{tpu_custom_call.1} parent=5 // pred_check_branch
        %234 = sbr.rel (%p231) target = $region40
      $region39: #{tpu_custom_call.1} parent=5 // pred_region
        %s235 = ssub.s32 %s21, 1
        %s236 = sand.u32 %s34, 1
        %s237 = scalar_lea.sflag [#allocation4], %s236
        %s238 = sand.u32 %s34, 1
        %s239 = smul.addr %s238, 8
        %s240 = scalar_lea.vmem [#allocation3], %s239
        // Predicated region
        $region41: #{tpu_custom_call.1} parent=39 // pred_check
          %p241 = pneg %p47
        $region42: #{tpu_custom_call.1} parent=39 // pred_check_branch
          %243 = sbr.rel (%p241) target = $region44
        $region43: #{tpu_custom_call.1} parent=39 // pred_region
          %245 = dma.done %s237, 128
        $region44: #{tpu_custom_call.1} parent=39 // pred_fallthru
          _
        // Predicated region
        $region45: #{tpu_custom_call.1} parent=39 // pred_check
          %p246 = pneg %p68
        $region46: #{tpu_custom_call.1} parent=39 // pred_check_branch
          %248 = sbr.rel (%p246) target = $region48
        $region47: #{tpu_custom_call.1} parent=39 // pred_region
          %250 = dma.done [#allocation6], 64
        $region48: #{tpu_custom_call.1} parent=39 // pred_fallthru
          _
        // Predicated region
        $region49: #{tpu_custom_call.1} parent=39 // pred_check
          %p251 = pneg %p89
        $region50: #{tpu_custom_call.1} parent=39 // pred_check_branch
          %253 = sbr.rel (%p251) target = $region52
        $region51: #{tpu_custom_call.1} parent=39 // pred_region
          %255 = dma.done [#allocation7], 16
        $region52: #{tpu_custom_call.1} parent=39 // pred_fallthru
          _
        // Predicated region
        $region53: #{tpu_custom_call.1} parent=39 // pred_check
          %p256 = pneg %p110
        $region54: #{tpu_custom_call.1} parent=39 // pred_check_branch
          %258 = sbr.rel (%p256) target = $region56
        $region55: #{tpu_custom_call.1} parent=39 // pred_region
          %260 = dma.done [#allocation11], 16
        $region56: #{tpu_custom_call.1} parent=39 // pred_fallthru
          _
        %261 = sfence
        %s262 = sand.u32 %s34, 1
        %s263 = scalar_lea.sflag [#allocation4], %s262
        %s264 = sand.u32 %s34, 1
        %s265 = smul.addr %s264, 8
        %s266 = scalar_lea.vmem [#allocation3], %s265
        %p267 = pneg %p47
        %p268 = pneg %p44
        %p269 = pneg %p68
        %p270 = pneg %p65
        %p271 = pneg %p89
        %p272 = pneg %p86
        %p273 = pneg %p110
        %p274 = pneg %p107
        %p275 = pneg %p131
        %p276 = pneg %p128
        %p277 = pneg %p157
        %p278 = pneg %p154
        %s279 = sand.u32 %s144, 1
        %s280 = scalar_lea.sflag [#allocation5], %s279
        %s281 = sand.u32 %s144, 1
        %s282 = smul.addr %s281, 2
        %s283 = scalar_lea.vmem [#allocation12], %s282
        %v284 = vld [vmem:[%s240] ss:$4 sm:$0x3]
        %s285 = scalar_lea.vmem %s240, 1 [#allocation3]
        %v286 = vld [vmem:[%s285] ss:$4 sm:$0x3]
        %s287 = scalar_lea.vmem %s240, 2 [#allocation3]
        %v288 = vld [vmem:[%s287] ss:$4 sm:$0x3]
        %s289 = scalar_lea.vmem %s240, 3 [#allocation3]
        %v290 = vld [vmem:[%s289] ss:$4 sm:$0x3]
        %s291 = sld [smem:[#allocation2]]
        %v292 = vstv %s291
        %v293 = vadd.f32 %v292, 0.0
        %s294 = sld [smem:[#allocation9]]
        %v295 = vstv %s294
        %v296 = vadd.f32 %v295, 0.0
        %s297 = sld [smem:[#allocation8]]
        %v298 = vstv %s297
        %v299 = vmul.f32 %v284, %v298
        %v300 = vadd.f32 %v296, %v299
        %s301 = sld [smem:[#allocation8 + $0x80]]
        %v302 = vstv %s301
        %v303 = vmul.f32 %v286, %v302
        %v304 = vadd.f32 %v300, %v303
        %s305 = sld [smem:[#allocation8 + $0x100]]
        %v306 = vstv %s305
        %v307 = vmul.f32 %v288, %v306
        %v308 = vadd.f32 %v304, %v307
        %s309 = sld [smem:[#allocation8 + $0x180]]
        %v310 = vstv %s309
        %v311 = vmul.f32 %v290, %v310
        %v312 = vadd.f32 %v308, %v311
        %v313 = vmax.f32 %v312, 0.0
        %s314 = sld [smem:[#allocation10]]
        %v315 = vstv %s314
        %v316 = vmul.f32 %v313, %v315
        %v317 = vadd.f32 %v293, %v316
        %s318 = sld [smem:[#allocation9 + $0x1]]
        %v319 = vstv %s318
        %v320 = vadd.f32 %v319, 0.0
        %s321 = sld [smem:[#allocation8 + $0x1]]
        %v322 = vstv %s321
        %v323 = vmul.f32 %v284, %v322
        %v324 = vadd.f32 %v320, %v323
        %s325 = sld [smem:[#allocation8 + $0x81]]
        %v326 = vstv %s325
        %v327 = vmul.f32 %v286, %v326
        %v328 = vadd.f32 %v324, %v327
        %s329 = sld [smem:[#allocation8 + $0x101]]
        %v330 = vstv %s329
        %v331 = vmul.f32 %v288, %v330
        %v332 = vadd.f32 %v328, %v331
        %s333 = sld [smem:[#allocation8 + $0x181]]
        %v334 = vstv %s333
        %v335 = vmul.f32 %v290, %v334
        %v336 = vadd.f32 %v332, %v335
        %v337 = vmax.f32 %v336, 0.0
        %s338 = sld [smem:[#allocation10 + $0x1]]
        %v339 = vstv %s338
        %v340 = vmul.f32 %v337, %v339
        %v341 = vadd.f32 %v317, %v340
        %s342 = sld [smem:[#allocation9 + $0x2]]
        %v343 = vstv %s342
        %v344 = vadd.f32 %v343, 0.0
        %s345 = sld [smem:[#allocation8 + $0x2]]
        %v346 = vstv %s345
        %v347 = vmul.f32 %v284, %v346
        %v348 = vadd.f32 %v344, %v347
        %s349 = sld [smem:[#allocation8 + $0x82]]
        %v350 = vstv %s349
        %v351 = vmul.f32 %v286, %v350
        %v352 = vadd.f32 %v348, %v351
        %s353 = sld [smem:[#allocation8 + $0x102]]
        %v354 = vstv %s353
        %v355 = vmul.f32 %v288, %v354
        %v356 = vadd.f32 %v352, %v355
        %s357 = sld [smem:[#allocation8 + $0x182]]
        %v358 = vstv %s357
        %v359 = vmul.f32 %v290, %v358
        %v360 = vadd.f32 %v356, %v359
        %v361 = vmax.f32 %v360, 0.0
        %s362 = sld [smem:[#allocation10 + $0x2]]
        %v363 = vstv %s362
        %v364 = vmul.f32 %v361, %v363
        %v365 = vadd.f32 %v341, %v364
        %s366 = sld [smem:[#allocation9 + $0x3]]
        %v367 = vstv %s366
        %v368 = vadd.f32 %v367, 0.0
        %s369 = sld [smem:[#allocation8 + $0x3]]
        %v370 = vstv %s369
        %v371 = vmul.f32 %v284, %v370
        %v372 = vadd.f32 %v368, %v371
        %s373 = sld [smem:[#allocation8 + $0x83]]
        %v374 = vstv %s373
        %v375 = vmul.f32 %v286, %v374
        %v376 = vadd.f32 %v372, %v375
        %s377 = sld [smem:[#allocation8 + $0x103]]
        %v378 = vstv %s377
        %v379 = vmul.f32 %v288, %v378
        %v380 = vadd.f32 %v376, %v379
        %s381 = sld [smem:[#allocation8 + $0x183]]
        %v382 = vstv %s381
        %v383 = vmul.f32 %v290, %v382
        %v384 = vadd.f32 %v380, %v383
        %v385 = vmax.f32 %v384, 0.0
        %s386 = sld [smem:[#allocation10 + $0x3]]
        %v387 = vstv %s386
        %v388 = vmul.f32 %v385, %v387
        %v389 = vadd.f32 %v365, %v388
        %s390 = sld [smem:[#allocation9 + $0x4]]
        %v391 = vstv %s390
        %v392 = vadd.f32 %v391, 0.0
        %s393 = sld [smem:[#allocation8 + $0x4]]
        %v394 = vstv %s393
        %v395 = vmul.f32 %v284, %v394
        %v396 = vadd.f32 %v392, %v395
        %s397 = sld [smem:[#allocation8 + $0x84]]
        %v398 = vstv %s397
        %v399 = vmul.f32 %v286, %v398
        %v400 = vadd.f32 %v396, %v399
        %s401 = sld [smem:[#allocation8 + $0x104]]
        %v402 = vstv %s401
        %v403 = vmul.f32 %v288, %v402
        %v404 = vadd.f32 %v400, %v403
        %s405 = sld [smem:[#allocation8 + $0x184]]
        %v406 = vstv %s405
        %v407 = vmul.f32 %v290, %v406
        %v408 = vadd.f32 %v404, %v407
        %v409 = vmax.f32 %v408, 0.0
        %s410 = sld [smem:[#allocation10 + $0x4]]
        %v411 = vstv %s410
        %v412 = vmul.f32 %v409, %v411
        %v413 = vadd.f32 %v389, %v412
        %s414 = sld [smem:[#allocation9 + $0x5]]
        %v415 = vstv %s414
        %v416 = vadd.f32 %v415, 0.0
        %s417 = sld [smem:[#allocation8 + $0x5]]
        %v418 = vstv %s417
        %v419 = vmul.f32 %v284, %v418
        %v420 = vadd.f32 %v416, %v419
        %s421 = sld [smem:[#allocation8 + $0x85]]
        %v422 = vstv %s421
        %v423 = vmul.f32 %v286, %v422
        %v424 = vadd.f32 %v420, %v423
        %s425 = sld [smem:[#allocation8 + $0x105]]
        %v426 = vstv %s425
        %v427 = vmul.f32 %v288, %v426
        %v428 = vadd.f32 %v424, %v427
        %s429 = sld [smem:[#allocation8 + $0x185]]
        %v430 = vstv %s429
        %v431 = vmul.f32 %v290, %v430
        %v432 = vadd.f32 %v428, %v431
        %v433 = vmax.f32 %v432, 0.0
        %s434 = sld [smem:[#allocation10 + $0x5]]
        %v435 = vstv %s434
        %v436 = vmul.f32 %v433, %v435
        %v437 = vadd.f32 %v413, %v436
        %s438 = sld [smem:[#allocation9 + $0x6]]
        %v439 = vstv %s438
        %v440 = vadd.f32 %v439, 0.0
        %s441 = sld [smem:[#allocation8 + $0x6]]
        %v442 = vstv %s441
        %v443 = vmul.f32 %v284, %v442
        %v444 = vadd.f32 %v440, %v443
        %s445 = sld [smem:[#allocation8 + $0x86]]
        %v446 = vstv %s445
        %v447 = vmul.f32 %v286, %v446
        %v448 = vadd.f32 %v444, %v447
        %s449 = sld [smem:[#allocation8 + $0x106]]
        %v450 = vstv %s449
        %v451 = vmul.f32 %v288, %v450
        %v452 = vadd.f32 %v448, %v451
        %s453 = sld [smem:[#allocation8 + $0x186]]
        %v454 = vstv %s453
        %v455 = vmul.f32 %v290, %v454
        %v456 = vadd.f32 %v452, %v455
        %v457 = vmax.f32 %v456, 0.0
        %s458 = sld [smem:[#allocation10 + $0x6]]
        %v459 = vstv %s458
        %v460 = vmul.f32 %v457, %v459
        %v461 = vadd.f32 %v437, %v460
        %s462 = sld [smem:[#allocation9 + $0x7]]
        %v463 = vstv %s462
        %v464 = vadd.f32 %v463, 0.0
        %s465 = sld [smem:[#allocation8 + $0x7]]
        %v466 = vstv %s465
        %v467 = vmul.f32 %v284, %v466
        %v468 = vadd.f32 %v464, %v467
        %s469 = sld [smem:[#allocation8 + $0x87]]
        %v470 = vstv %s469
        %v471 = vmul.f32 %v286, %v470
        %v472 = vadd.f32 %v468, %v471
        %s473 = sld [smem:[#allocation8 + $0x107]]
        %v474 = vstv %s473
        %v475 = vmul.f32 %v288, %v474
        %v476 = vadd.f32 %v472, %v475
        %s477 = sld [smem:[#allocation8 + $0x187]]
        %v478 = vstv %s477
        %v479 = vmul.f32 %v290, %v478
        %v480 = vadd.f32 %v476, %v479
        %v481 = vmax.f32 %v480, 0.0
        %s482 = sld [smem:[#allocation10 + $0x7]]
        %v483 = vstv %s482
        %v484 = vmul.f32 %v481, %v483
        %v485 = vadd.f32 %v461, %v484
        %v487 = vperm.slane %v485, 0
        %v488 = vperm.slane %v485, 1
        %vm491 = vcmask 1040384
        %v492 = vsel %vm491, %v487, -inf
        %v493 = vsel %vm491, %v488, -inf
        %v494 = vmax.f32 %v492, %v493
        %495 = vmax.xlane.f32.xlu0 %v494
        %v496 = vpop.xlane.xlu0 %495
        %v498 = vperm.slane %v496, 0
        %v500 = vsub.f32 %v485, %v498
        %v501 = vmul.f32 %v500, 1.442695
        %v502 = vpow.pop %v501
        %v504 = vperm.slane %v502, 0
        %v505 = vperm.slane %v502, 1
        %v508 = vsel %vm491, %v504, 0.0
        %v509 = vsel %vm491, %v505, 0.0
        %v510 = vadd.f32 %v508, %v509
        %511 = vadd.xlane.f32.xlu0 %v510
        %v512 = vpop.xlane.xlu0 %511
        %v514 = vperm.slane %v512, 0
        %v516 = vrcp.pop %v514
        %v517 = vmul.f32 %v514, %v516
        %v518 = vsub.f32 1.0, %v517
        %v519 = vmul.f32 %v516, %v518
        %v520 = vadd.f32 %v516, %v519
        %vm521 = vweird.f32 %v514
        %vm522 = vweird.f32 %v516
        %vm523 = vmor %vm521, %vm522
        %v524 = vsel %vm523, %v516, %v520
        %v525 = vand.u32 2147483647, %v514
        %vm526 = vcmp.eq.f32.partialorder %v525, 8.507059e+37
        %v527 = vand.u32 %v514, 2147483648
        %v528 = vor.u32 1.1754944e-38, %v527
        %v529 = vsel %vm526, %v528, %v524
        %v530 = vmul.f32 %v502, %v529
        %v531 = vlaneseq
        %vm532 = vcmp.ge.s32.totalorder %v531, 0
        %vm533 = vcmp.lt.s32.totalorder %v531, 256
        %vm534 = vmand %vm532, %vm533
        %535 = vst.msk [vmem:[%s283] sm:$0x3] %vm534, %v530
        %s536 = sand.u32 %s144, 1
        %s537 = scalar_lea.sflag [#allocation5], %s536
        %s538 = sand.u32 %s144, 1
        %s539 = smul.addr %s538, 2
        %s540 = scalar_lea.vmem [#allocation12], %s539
        // Predicated region
        $region57: #{tpu_custom_call.1} parent=39 // pred_check
          %p541 = pneg %p154
        $region58: #{tpu_custom_call.1} parent=39 // pred_check_branch
          %543 = sbr.rel (%p541) target = $region60
        $region59: #{tpu_custom_call.1} parent=39 // pred_region
          %545 = vsyncadd %s537, 0
          %s546 = smul.addr %s26, 2
          %s547 = scalar_lea.hbm %s5, %s546
          %s549 = sshll.u32 %s540, 4
          %s550 = int_to_ptr.vmem [resolvable:$true] %s549
          %s551 = sshll.u32 %s547, 4
          %s552 = int_to_ptr.hbm [resolvable:$true] %s551
          %554 = dma.vmem_to_hbm [thread:$0]  %s550, 32, %s552, %s537
        $region60: #{tpu_custom_call.1} parent=39 // pred_fallthru
          _
      $region40: #{tpu_custom_call.1} parent=5 // pred_fallthru
        _
      %p555 = scmp.le.s32.totalorder 2, %s21
      // Predicated region
      $region61: #{tpu_custom_call.1} parent=5 // pred_check
        %p556 = pneg %p555
      $region62: #{tpu_custom_call.1} parent=5 // pred_check_branch
        %558 = sbr.rel (%p556) target = $region64
      $region63: #{tpu_custom_call.1} parent=5 // pred_region
        %s559 = ssub.s32 %s21, 2
        // Predicated region
        $region65: #{tpu_custom_call.1} parent=63 // pred_check
          %p560 = pneg %p160
        $region66: #{tpu_custom_call.1} parent=63 // pred_check_branch
          %562 = sbr.rel (%p560) target = $region68
        $region67: #{tpu_custom_call.1} parent=63 // pred_region
          %s563 = sand.u32 %s145, 1
          %s564 = scalar_lea.sflag [#allocation5], %s563
          %s565 = sand.u32 %s145, 1
          %s566 = smul.addr %s565, 2
          %s567 = scalar_lea.vmem [#allocation12], %s566
          %569 = dma.done %s564, 32
        $region68: #{tpu_custom_call.1} parent=63 // pred_fallthru
          _
      $region64: #{tpu_custom_call.1} parent=5 // pred_fallthru
        _
    $region6: #{tpu_custom_call.1} parent=1 // loop_footer
      %s25 = sadd.s32 1, %s21
    $region7: #{tpu_custom_call.1} parent=1 // loop_footer_branch
      %20 = sbr.rel target = $region3
    $region8: #{tpu_custom_call.1} parent=1 // loop_exit
      _
    %570 = vsyncpa [#allocation4], 1
    %s571 = scalar_lea.sflag [#allocation4], 1
    %572 = vsyncpa %s571, 1
    %573 = vsyncpa [#allocation5], 1
    %s574 = scalar_lea.sflag [#allocation5], 1
    %575 = vsyncpa %s574, 1
    %576 = vsyncpa [#allocation6], 1
    %s577 = scalar_lea.sflag [#allocation6], 1
    %578 = vsyncpa %s577, 1
    %579 = vsyncpa [#allocation7], 1
    %s580 = scalar_lea.sflag [#allocation7], 1
    %581 = vsyncpa %s580, 1
    %582 = vsyncpa [#allocation11], 1

</llo_original>
